<compile_context>
chip_gen: v6e
topology: v6e:2x2x1
jax: 0.10.0
libtpu: 0.0.40
codegen_flags: <defaults>
</compile_context>

<pallas_src>
import math

import jax
import jax.numpy as jnp
from jax.experimental import pallas as pl
from jax.experimental.pallas import tpu as pltpu


def _se_mlp_kernel(x_ref, w1_ref, b1_ref, w2_ref, b2_ref, o_ref):
    # x_ref:  (tm, channels)      activation row tile (un-padded channels)
    # w1_ref: (channels, hidden)  fc1 weight, pre-transposed, full-array block
    # b1_ref: (1, hidden)         fc1 bias
    # w2_ref: (hidden, out_f)     fc2 weight, pre-transposed, full-array block
    # b2_ref: (1, out_f)          fc2 bias
    # o_ref:  (tm, out_f)         output row tile
    h = jnp.dot(x_ref[...], w1_ref[...], preferred_element_type=jnp.float32)
    h = jnp.maximum(h + b1_ref[...].astype(jnp.float32), 0.0)
    # Keep the fc1 accumulator in f32; upcast weights (no-op for f32 params).
    o = jnp.dot(h, w2_ref[...].astype(jnp.float32),
                preferred_element_type=jnp.float32)
    o_ref[...] = (o + b2_ref[...].astype(jnp.float32)).astype(o_ref.dtype)


def _pick_row_tile(m):
    """Row-tile size: multiple of 8 (or the full dim for tiny m), always <= m."""
    if m < 8:
        return m                       # block dim == full array dim
    if m > 1024:
        return 512                     # big tiles -> near HBM roofline
    return max(8, (m // 2) // 8 * 8)   # ~2 tiles -> both v7x TensorCores busy


def prepare_se_params(w1, b1, w2, b2):
    """One-time (model-load) weight preparation.

    w1: (hidden, channels)    PyTorch nn.Linear layout (hidden = reduction // 8)
    b1: (hidden,)
    w2: (out_features, hidden)
    b2: (out_features,)

    Weights are transposed once to the MXU-friendly (K, N) layout.  No zero
    padding: every weight/bias block in the kernel is a full-array block, so
    the (8,128) block-shape rule does not require padded feature axes.
    """
    hidden, channels = w1.shape
    out_f, hidden2 = w2.shape
    assert hidden2 == hidden and b1.shape == (hidden,) and b2.shape == (out_f,)
    return dict(
        w1=jnp.asarray(w1).T,                   # (channels, hidden)
        b1=jnp.asarray(b1).reshape(1, hidden),  # (1, hidden)
        w2=jnp.asarray(w2).T,                   # (hidden, out_f)
        b2=jnp.asarray(b2).reshape(1, out_f),   # (1, out_f)
        channels=channels,
        hidden=hidden,
        out_features=out_f,
    )


def se_module_forward(x, params):
    """SEModule.forward: fc2(relu(fc1(x))) applied along the last axis of x."""
    channels = params["channels"]
    hidden = params["hidden"]
    out_f = params["out_features"]
    w1, b1, w2, b2 = params["w1"], params["b1"], params["w2"], params["b2"]

    assert x.shape[-1] == channels
    lead = x.shape[:-1]
    m = math.prod(lead) if lead else 1
    x2 = x.reshape(m, channels)        # contiguous reshape: no copy

    tm = _pick_row_tile(m)
    grid = (pl.cdiv(m, tm),)           # masked trailing tile; no row padding

    out = pl.pallas_call(
        _se_mlp_kernel,
        out_shape=jax.ShapeDtypeStruct((m, out_f), x.dtype),
        grid=grid,
        in_specs=[
            pl.BlockSpec((tm, channels), lambda i: (i, 0)),      # x rows
            pl.BlockSpec((channels, hidden), lambda i: (0, 0)),  # fc1 weight
            pl.BlockSpec((1, hidden), lambda i: (0, 0)),         # fc1 bias
            pl.BlockSpec((hidden, out_f), lambda i: (0, 0)),     # fc2 weight
            pl.BlockSpec((1, out_f), lambda i: (0, 0)),          # fc2 bias
        ],
        out_specs=pl.BlockSpec((tm, out_f), lambda i: (i, 0)),
        compiler_params=pltpu.CompilerParams(
            dimension_semantics=("parallel",),
        ),
    )(x2, w1, b1, w2, b2)

    return out.reshape(*lead, out_f)


if __name__ == "__main__":
    key = jax.random.PRNGKey(0)
    kx, k1, kb1, k2, kb2 = jax.random.split(key, 5)

    # SEModule(channels=32, reduction=64): fc1: 32 -> 8, fc2: 8 -> 64.
    channels, reduction = 32, 64
    hidden = reduction // 8  # 8
    batch, spatial = 2, 16

    # forward applies nn.Linear directly, so the last axis must be `channels`.
    x = jax.random.normal(kx, (batch, spatial, spatial, channels), jnp.float32)

    bound1 = 1.0 / (channels ** 0.5)
    w1 = jax.random.uniform(k1, (hidden, channels), jnp.float32, -bound1, bound1)
    b1 = jax.random.uniform(kb1, (hidden,), jnp.float32, -bound1, bound1)
    bound2 = 1.0 / (hidden ** 0.5)
    w2 = jax.random.uniform(k2, (reduction, hidden), jnp.float32, -bound2, bound2)
    b2 = jax.random.uniform(kb2, (reduction,), jnp.float32, -bound2, bound2)

    params = prepare_se_params(w1, b1, w2, b2)

    # 4-D input: m = 2*16*16 = 512 rows -> tm = 256, grid = (2,).
    out = se_module_forward(x, params)
    jax.block_until_ready(out)
    ref = jnp.maximum(x @ w1.T + b1, 0.0) @ w2.T + b2
    assert out.shape == (batch, spatial, spatial, reduction)
    assert jnp.allclose(out, ref, atol=1e-4, rtol=1e-4)

    # 2-D input path (tiny batch, full-dim row block, masked lane store).
    x2 = x[:, 0, 0, :]
    out2 = se_module_forward(x2, params)
    jax.block_until_ready(out2)
    ref2 = jnp.maximum(x2 @ w1.T + b1, 0.0) @ w2.T + b2
    assert out2.shape == (batch, reduction)
    assert jnp.allclose(out2, ref2, atol=1e-4, rtol=1e-4)

    print("KERNEL_OK")
</pallas_src>

<mosaic_0001>
module attributes {stable_mosaic.version = 11 : i64} {
  func.func @_se_mlp_kernel(%arg0: i32, %arg1: memref<256x32xf32, #tpu.memory_space<vmem>>, %arg2: memref<32x8xf32, #tpu.memory_space<vmem>>, %arg3: memref<1x8xf32, #tpu.memory_space<vmem>>, %arg4: memref<8x64xf32, #tpu.memory_space<vmem>>, %arg5: memref<1x64xf32, #tpu.memory_space<vmem>>, %arg6: memref<256x64xf32, #tpu.memory_space<vmem>>) attributes {dimension_semantics = [#tpu.dimension_semantics<parallel>], iteration_bounds = array<i64: 2>, scalar_prefetch = 0 : i64, scratch_operands = 0 : i64, tpu.core_type = #tpu.core_type<tc>, window_params = [{transform_indices = @transform_0, window_bounds = array<i64: 256, 32>}, {pipeline_mode = #tpu.pipeline_mode<synchronous>, transform_indices = @transform_1, window_bounds = array<i64: 32, 8>}, {pipeline_mode = #tpu.pipeline_mode<synchronous>, transform_indices = @transform_2, window_bounds = array<i64: 1, 8>}, {pipeline_mode = #tpu.pipeline_mode<synchronous>, transform_indices = @transform_3, window_bounds = array<i64: 8, 64>}, {pipeline_mode = #tpu.pipeline_mode<synchronous>, transform_indices = @transform_4, window_bounds = array<i64: 1, 64>}, {transform_indices = @transform_5, window_bounds = array<i64: 256, 64>}]} {
    %c0 = arith.constant 0 : index
    %c0_0 = arith.constant 0 : index
    %0 = vector.load %arg1[%c0, %c0_0] : memref<256x32xf32, #tpu.memory_space<vmem>>, vector<256x32xf32>
    %c0_1 = arith.constant 0 : index
    %c0_2 = arith.constant 0 : index
    %1 = vector.load %arg2[%c0_1, %c0_2] : memref<32x8xf32, #tpu.memory_space<vmem>>, vector<32x8xf32>
    %cst = arith.constant dense<0.000000e+00> : vector<256x8xf32>
    %2 = tpu.matmul %0, %1, %cst {dimension_numbers = #tpu.dot_dimension_numbers<[1], [0], [0], [1], [0, 0, 1, 1], [], []>} : vector<256x32xf32>, vector<32x8xf32>, vector<256x8xf32> -> vector<256x8xf32>
    %c0_3 = arith.constant 0 : index
    %c0_4 = arith.constant 0 : index
    %3 = vector.load %arg3[%c0_3, %c0_4] : memref<1x8xf32, #tpu.memory_space<vmem>>, vector<1x8xf32>
    %4 = vector.broadcast %3 : vector<1x8xf32> to vector<256x8xf32>
    %5 = arith.addf %2, %4 : vector<256x8xf32>
    %cst_5 = arith.constant 0.000000e+00 : f32
    %6 = vector.broadcast %cst_5 : f32 to vector<256x8xf32>
    %7 = arith.maximumf %5, %6 : vector<256x8xf32>
    %c0_6 = arith.constant 0 : index
    %c0_7 = arith.constant 0 : index
    %8 = vector.load %arg4[%c0_6, %c0_7] : memref<8x64xf32, #tpu.memory_space<vmem>>, vector<8x64xf32>
    %cst_8 = arith.constant dense<0.000000e+00> : vector<256x64xf32>
    %9 = tpu.matmul %7, %8, %cst_8 {dimension_numbers = #tpu.dot_dimension_numbers<[1], [0], [0], [1], [0, 0, 1, 1], [], []>} : vector<256x8xf32>, vector<8x64xf32>, vector<256x64xf32> -> vector<256x64xf32>
    %c0_9 = arith.constant 0 : index
    %c0_10 = arith.constant 0 : index
    %10 = vector.load %arg5[%c0_9, %c0_10] : memref<1x64xf32, #tpu.memory_space<vmem>>, vector<1x64xf32>
    %11 = vector.broadcast %10 : vector<1x64xf32> to vector<256x64xf32>
    %12 = arith.addf %9, %11 : vector<256x64xf32>
    %c0_11 = arith.constant 0 : index
    %c0_12 = arith.constant 0 : index
    %13 = vector.load %arg6[%c0_11, %c0_12] : memref<256x64xf32, #tpu.memory_space<vmem>>, vector<256x64xf32>
    tpu.vector_store %arg6[%c0_11, %c0_12], %12 {strides = array<i32>} : memref<256x64xf32, #tpu.memory_space<vmem>>, vector<256x64xf32>,
    return
  }
  func.func @transform_0(%arg0: i32) -> (i32, i32) {
    %c0_i32 = arith.constant 0 : i32
    %c0_i32_0 = arith.constant 0 : i32
    return %arg0, %c0_i32 : i32, i32
  }
  func.func @transform_1(%arg0: i32) -> (i32, i32) {
    %c0_i32 = arith.constant 0 : i32
    %c0_i32_0 = arith.constant 0 : i32
    %c0_i32_1 = arith.constant 0 : i32
    return %c0_i32, %c0_i32_0 : i32, i32
  }
  func.func @transform_2(%arg0: i32) -> (i32, i32) {
    %c0_i32 = arith.constant 0 : i32
    %c0_i32_0 = arith.constant 0 : i32
    %c0_i32_1 = arith.constant 0 : i32
    return %c0_i32, %c0_i32_0 : i32, i32
  }
  func.func @transform_3(%arg0: i32) -> (i32, i32) {
    %c0_i32 = arith.constant 0 : i32
    %c0_i32_0 = arith.constant 0 : i32
    %c0_i32_1 = arith.constant 0 : i32
    return %c0_i32, %c0_i32_0 : i32, i32
  }
  func.func @transform_4(%arg0: i32) -> (i32, i32) {
    %c0_i32 = arith.constant 0 : i32
    %c0_i32_0 = arith.constant 0 : i32
    %c0_i32_1 = arith.constant 0 : i32
    return %c0_i32, %c0_i32_0 : i32, i32
  }
  func.func @transform_5(%arg0: i32) -> (i32, i32) {
    %c0_i32 = arith.constant 0 : i32
    %c0_i32_0 = arith.constant 0 : i32
    return %arg0, %c0_i32 : i32, i32
  }
}

</mosaic_0001>

<llo_original>
// kernel: tpu_custom_call.1
$region0: #{tpu_custom_call.1}
  #allocation0 [shape = 'u32[]', space=smem, size = 0x4, offset = 0x4, fixed_abs, tag = 'smem constant byte address 0x4 - core index']
  #allocation1 [shape = 'u32[144,128]{1,0:T(1,128)}', space=vmem, size = 0x12000, scoped, tag = 'internal scratch']
  %s0 = inlined_call_operand.vmem [shape: f32[512,32], index: 0, kind: input, shape index: {}]
  %s1 = inlined_call_operand.vmem [shape: f32[32,8], index: 1, kind: input, shape index: {}]
  %s2 = inlined_call_operand.vmem [shape: f32[1,8], index: 2, kind: input, shape index: {}]
  %s3 = inlined_call_operand.vmem [shape: f32[8,64], index: 3, kind: input, shape index: {}]
  %s4 = inlined_call_operand.vmem [shape: f32[1,64], index: 4, kind: input, shape index: {}]
  %s5 = inlined_call_operand.vmem [shape: f32[512,64], index: 5, kind: output, shape index: {}]
  %s6 = sld [smem:[#allocation0]]
  $region53: #{tpu_custom_call.1} parent=0
    _
  %s8 = ssub.s32 1, %s6
  %s9 = scalar_select 0, %s8, %s6
  loop: start=0, step=1, limit=4
  $region2: #{tpu_custom_call.1} parent=0 // loop_pre_header
    _
  $region3: #{tpu_custom_call.1} parent=0 // loop_header
    %s11 = sphi 0, %s15
    %p12 = scmp.ge.s32.totalorder %s11, 4
    %s21 = sphi 0, %s23
    %s24 = sphi 0, %s21
    %s25 = sphi 0, %s24
    %s41 = sphi 0, %s25
    %s45 = sphi 0, %s45
    %s47 = sphi 0, %s45
    %s48 = sphi 0, %s47
    %s62 = sphi 0, %s48
    %s66 = sphi 0, %s66
    %s68 = sphi 0, %s66
    %s69 = sphi 0, %s68
    %s83 = sphi 0, %s69
    %s87 = sphi 0, %s87
    %s89 = sphi 0, %s87
    %s90 = sphi 0, %s89
    %s104 = sphi 0, %s90
    %s108 = sphi 0, %s108
    %s110 = sphi 0, %s108
    %s111 = sphi 0, %s110
    %s125 = sphi 0, %s111
    %s131 = sphi 0, %s133
    %s134 = sphi 0, %s131
    %s135 = sphi 0, %s134
    %s151 = sphi 0, %s135
  $region4: #{tpu_custom_call.1} parent=0 // loop_header_branch
    %14 = sbr.rel (%p12) target = $region8
  $region5: #{tpu_custom_call.1} parent=0 // loop_body
    %s16 = ssub.s32 %s11, 1
    %s17 = ssub.s32 %s11, 2
    %s18 = sadd.s32 %s11, 1
    %s19 = ssub.s32 %s11, %s18
    %p20 = scmp.eq.s32.totalorder %s19, 0
    %s22 = sadd.s32 %s21, 1
    %s23 = scalar_select %p20, %s21, %s22
    %p26 = pneg %p20
    %p27 = scmp.eq.s32.totalorder %s11, 1
    %p28 = por %p26, %p27
    %p29 = scmp.ne.s32.totalorder %s21, %s24
    %p30 = scmp.eq.s32.totalorder %s11, 0
    %p31 = por %p29, %p30
    %p32 = scmp.ne.s32.totalorder %s21, %s24
    %p33 = scmp.eq.s32.totalorder %s16, 1
    %p34 = por %p32, %p33
    %p35 = scmp.ne.s32.totalorder %s24, %s25
    %p36 = scmp.eq.s32.totalorder %s16, 0
    %p37 = por %p35, %p36
    %p38 = scmp.ne.s32.totalorder %s24, %s25
    %p39 = scmp.eq.s32.totalorder %s17, 1
    %p40 = por %p38, %p39
    %p42 = scmp.ne.s32.totalorder %s25, %s41
    %p43 = scmp.eq.s32.totalorder %s17, 0
    %p44 = por %p42, %p43
    %s46 = sadd.s32 %s45, 1
    %p49 = scmp.eq.s32.totalorder %s11, 1
    %p50 = scmp.ne.s32.totalorder %s45, %s47
    %p51 = scmp.eq.s32.totalorder %s11, 0
    %p52 = por %p50, %p51
    %p53 = scmp.ne.s32.totalorder %s45, %s47
    %p54 = scmp.eq.s32.totalorder %s16, 1
    %p55 = por %p53, %p54
    %p56 = scmp.ne.s32.totalorder %s47, %s48
    %p57 = scmp.eq.s32.totalorder %s16, 0
    %p58 = por %p56, %p57
    %p59 = scmp.ne.s32.totalorder %s47, %s48
    %p60 = scmp.eq.s32.totalorder %s17, 1
    %p61 = por %p59, %p60
    %p63 = scmp.ne.s32.totalorder %s48, %s62
    %p64 = scmp.eq.s32.totalorder %s17, 0
    %p65 = por %p63, %p64
    %s67 = sadd.s32 %s66, 1
    %p70 = scmp.eq.s32.totalorder %s11, 1
    %p71 = scmp.ne.s32.totalorder %s66, %s68
    %p72 = scmp.eq.s32.totalorder %s11, 0
    %p73 = por %p71, %p72
    %p74 = scmp.ne.s32.totalorder %s66, %s68
    %p75 = scmp.eq.s32.totalorder %s16, 1
    %p76 = por %p74, %p75
    %p77 = scmp.ne.s32.totalorder %s68, %s69
    %p78 = scmp.eq.s32.totalorder %s16, 0
    %p79 = por %p77, %p78
    %p80 = scmp.ne.s32.totalorder %s68, %s69
    %p81 = scmp.eq.s32.totalorder %s17, 1
    %p82 = por %p80, %p81
    %p84 = scmp.ne.s32.totalorder %s69, %s83
    %p85 = scmp.eq.s32.totalorder %s17, 0
    %p86 = por %p84, %p85
    %s88 = sadd.s32 %s87, 1
    %p91 = scmp.eq.s32.totalorder %s11, 1
    %p92 = scmp.ne.s32.totalorder %s87, %s89
    %p93 = scmp.eq.s32.totalorder %s11, 0
    %p94 = por %p92, %p93
    %p95 = scmp.ne.s32.totalorder %s87, %s89
    %p96 = scmp.eq.s32.totalorder %s16, 1
    %p97 = por %p95, %p96
    %p98 = scmp.ne.s32.totalorder %s89, %s90
    %p99 = scmp.eq.s32.totalorder %s16, 0
    %p100 = por %p98, %p99
    %p101 = scmp.ne.s32.totalorder %s89, %s90
    %p102 = scmp.eq.s32.totalorder %s17, 1
    %p103 = por %p101, %p102
    %p105 = scmp.ne.s32.totalorder %s90, %s104
    %p106 = scmp.eq.s32.totalorder %s17, 0
    %p107 = por %p105, %p106
    %s109 = sadd.s32 %s108, 1
    %p112 = scmp.eq.s32.totalorder %s11, 1
    %p113 = scmp.ne.s32.totalorder %s108, %s110
    %p114 = scmp.eq.s32.totalorder %s11, 0
    %p115 = por %p113, %p114
    %p116 = scmp.ne.s32.totalorder %s108, %s110
    %p117 = scmp.eq.s32.totalorder %s16, 1
    %p118 = por %p116, %p117
    %p119 = scmp.ne.s32.totalorder %s110, %s111
    %p120 = scmp.eq.s32.totalorder %s16, 0
    %p121 = por %p119, %p120
    %p122 = scmp.ne.s32.totalorder %s110, %s111
    %p123 = scmp.eq.s32.totalorder %s17, 1
    %p124 = por %p122, %p123
    %p126 = scmp.ne.s32.totalorder %s111, %s125
    %p127 = scmp.eq.s32.totalorder %s17, 0
    %p128 = por %p126, %p127
    %s129 = ssub.s32 %s11, %s18
    %p130 = scmp.eq.s32.totalorder %s129, 0
    %s132 = sadd.s32 %s131, 1
    %s133 = scalar_select %p130, %s131, %s132
    %p136 = pneg %p130
    %p137 = scmp.eq.s32.totalorder %s11, 1
    %p138 = por %p136, %p137
    %p139 = scmp.ne.s32.totalorder %s131, %s134
    %p140 = scmp.eq.s32.totalorder %s11, 0
    %p141 = por %p139, %p140
    %p142 = scmp.ne.s32.totalorder %s131, %s134
    %p143 = scmp.eq.s32.totalorder %s16, 1
    %p144 = por %p142, %p143
    %p145 = scmp.ne.s32.totalorder %s134, %s135
    %p146 = scmp.eq.s32.totalorder %s16, 0
    %p147 = por %p145, %p146
    %p148 = scmp.ne.s32.totalorder %s134, %s135
    %p149 = scmp.eq.s32.totalorder %s17, 1
    %p150 = por %p148, %p149
    %p152 = scmp.ne.s32.totalorder %s135, %s151
    %p153 = scmp.eq.s32.totalorder %s17, 0
    %p154 = por %p152, %p153
    %p155 = scmp.le.s32.totalorder 1, %s11
    %p156 = scmp.lt.s32.totalorder %s11, 3
    %p157 = pnand %p155, %p156
    %p158 = pneg %p157
    // Predicated region
    $region9: #{tpu_custom_call.1} parent=5 // pred_check
      _
    $region10: #{tpu_custom_call.1} parent=5 // pred_check_branch
      %160 = sbr.rel (%p157) target = $region12
    $region11: #{tpu_custom_call.1} parent=5 // pred_region
      %s161 = ssub.s32 %s11, 1
      // Predicated region
      $region13: #{tpu_custom_call.1} parent=11 // pred_check
        %p162 = pneg %p58
      $region14: #{tpu_custom_call.1} parent=11 // pred_check_branch
        %164 = sbr.rel (%p162) target = $region16
      $region15: #{tpu_custom_call.1} parent=11 // pred_region
        _
      $region16: #{tpu_custom_call.1} parent=11 // pred_fallthru
        _
      // Predicated region
      $region17: #{tpu_custom_call.1} parent=11 // pred_check
        %p165 = pneg %p79
      $region18: #{tpu_custom_call.1} parent=11 // pred_check_branch
        %167 = sbr.rel (%p165) target = $region20
      $region19: #{tpu_custom_call.1} parent=11 // pred_region
        _
      $region20: #{tpu_custom_call.1} parent=11 // pred_fallthru
        _
      // Predicated region
      $region21: #{tpu_custom_call.1} parent=11 // pred_check
        %p168 = pneg %p100
      $region22: #{tpu_custom_call.1} parent=11 // pred_check_branch
        %170 = sbr.rel (%p168) target = $region24
      $region23: #{tpu_custom_call.1} parent=11 // pred_region
        _
      $region24: #{tpu_custom_call.1} parent=11 // pred_fallthru
        _
      // Predicated region
      $region25: #{tpu_custom_call.1} parent=11 // pred_check
        %p171 = pneg %p121
      $region26: #{tpu_custom_call.1} parent=11 // pred_check_branch
        %173 = sbr.rel (%p171) target = $region28
      $region27: #{tpu_custom_call.1} parent=11 // pred_region
        _
      $region28: #{tpu_custom_call.1} parent=11 // pred_fallthru
        _
    $region12: #{tpu_custom_call.1} parent=5 // pred_fallthru
      _
    %p174 = scmp.lt.s32.totalorder %s11, 2
    // Predicated region
    $region29: #{tpu_custom_call.1} parent=5 // pred_check
      %p175 = pneg %p174
    $region30: #{tpu_custom_call.1} parent=5 // pred_check_branch
      %177 = sbr.rel (%p175) target = $region32
    $region31: #{tpu_custom_call.1} parent=5 // pred_region
      // Predicated region
      $region33: #{tpu_custom_call.1} parent=31 // pred_check
        %p178 = pneg %p31
      $region34: #{tpu_custom_call.1} parent=31 // pred_check_branch
        %180 = sbr.rel (%p178) target = $region36
      $region35: #{tpu_custom_call.1} parent=31 // pred_region
        %s181 = smul.u32 32, %s11
        %p182 = scmp.lt.s32.totalorder %s181, 63
        %s183 = scalar_select %p182, %s181, 63
        %s184 = smul.addr %s183, 8
        %s185 = scalar_lea.vmem %s0, %s184
        %s186 = smul.u32 32, %s11
      $region36: #{tpu_custom_call.1} parent=31 // pred_fallthru
        _
    $region32: #{tpu_custom_call.1} parent=5 // pred_fallthru
      _
    %p187 = scmp.le.s32.totalorder 1, %s11
    %p188 = scmp.lt.s32.totalorder %s11, 3
    %p189 = pnand %p187, %p188
    %p190 = pneg %p189
    // Predicated region
    $region37: #{tpu_custom_call.1} parent=5 // pred_check
      _
    $region38: #{tpu_custom_call.1} parent=5 // pred_check_branch
      %192 = sbr.rel (%p189) target = $region40
    $region39: #{tpu_custom_call.1} parent=5 // pred_region
      %s193 = ssub.s32 %s11, 1
      %s194 = smul.u32 32, %s16
      %p195 = scmp.lt.s32.totalorder %s194, 63
      %s196 = scalar_select %p195, %s194, 63
      %s197 = smul.addr %s196, 8
      %s198 = scalar_lea.vmem %s0, %s197
      %p199 = pneg %p37
      %p200 = pneg %p34
      %p201 = pneg %p58
      %p202 = pneg %p55
      %p203 = pneg %p79
      %p204 = pneg %p76
      %p205 = pneg %p100
      %p206 = pneg %p97
      %p207 = pneg %p121
      %p208 = pneg %p118
      %p209 = pneg %p147
      %p210 = pneg %p144
      %s211 = smul.u32 32, %s16
      %p212 = scmp.lt.s32.totalorder %s211, 63
      %s213 = scalar_select %p212, %s211, 63
      %s214 = smul.addr %s213, 8
      %s215 = scalar_lea.vmem %s5, %s214
      %s216 = smul.u32 32, %s16
      %p217 = scmp.lt.s32.totalorder %s216, 63
      %s218 = scalar_select %p217, %s216, 63
      %s219 = smul.addr %s218, 8
      %s220 = scalar_lea.vmem %s0, %s219
      %s221 = smul.u32 32, %s16
      %s222 = smul.u32 32, %s16
      %p223 = scmp.lt.s32.totalorder %s222, 63
      %s224 = scalar_select %p223, %s222, 63
      %s225 = smul.addr %s224, 8
      %s226 = scalar_lea.vmem %s5, %s225
      %s227 = smul.u32 32, %s16
      %v228 = vld [vmem:[%s220] sm:$0xff]
      %v229 = vld [vmem:[%s220 + $0x8] sm:$0xff]
      %v230 = vld [vmem:[%s220 + $0x10] sm:$0xff]
      %v231 = vld [vmem:[%s220 + $0x18] sm:$0xff]
      %v232 = vld [vmem:[%s220 + $0x20] sm:$0xff]
      %v233 = vld [vmem:[%s220 + $0x28] sm:$0xff]
      %v234 = vld [vmem:[%s220 + $0x30] sm:$0xff]
      %v235 = vld [vmem:[%s220 + $0x38] sm:$0xff]
      %v236 = vld [vmem:[%s220 + $0x40] sm:$0xff]
      %v237 = vld [vmem:[%s220 + $0x48] sm:$0xff]
      %v238 = vld [vmem:[%s220 + $0x50] sm:$0xff]
      %v239 = vld [vmem:[%s220 + $0x58] sm:$0xff]
      %v240 = vld [vmem:[%s220 + $0x60] sm:$0xff]
      %v241 = vld [vmem:[%s220 + $0x68] sm:$0xff]
      %v242 = vld [vmem:[%s220 + $0x70] sm:$0xff]
      %v243 = vld [vmem:[%s220 + $0x78] sm:$0xff]
      %v244 = vld [vmem:[%s220 + $0x80] sm:$0xff]
      %v245 = vld [vmem:[%s220 + $0x88] sm:$0xff]
      %v246 = vld [vmem:[%s220 + $0x90] sm:$0xff]
      %v247 = vld [vmem:[%s220 + $0x98] sm:$0xff]
      %v248 = vld [vmem:[%s220 + $0xa0] sm:$0xff]
      %v249 = vld [vmem:[%s220 + $0xa8] sm:$0xff]
      %v250 = vld [vmem:[%s220 + $0xb0] sm:$0xff]
      %v251 = vld [vmem:[%s220 + $0xb8] sm:$0xff]
      %v252 = vld [vmem:[%s220 + $0xc0] sm:$0xff]
      %v253 = vld [vmem:[%s220 + $0xc8] sm:$0xff]
      %v254 = vld [vmem:[%s220 + $0xd0] sm:$0xff]
      %v255 = vld [vmem:[%s220 + $0xd8] sm:$0xff]
      %v256 = vld [vmem:[%s220 + $0xe0] sm:$0xff]
      %v257 = vld [vmem:[%s220 + $0xe8] sm:$0xff]
      %v258 = vld [vmem:[%s220 + $0xf0] sm:$0xff]
      %v259 = vld [vmem:[%s220 + $0xf8] sm:$0xff]
      %v260 = vld [vmem:[%s1] sm:$0xff]
      %v261 = vld [vmem:[%s1 + $0x8] sm:$0xff]
      %v262 = vld [vmem:[%s1 + $0x10] sm:$0xff]
      %v263 = vld [vmem:[%s1 + $0x18] sm:$0xff]
      %v264 = vld [vmem:[%s2] sm:$0x1]
      %v266 = vlaneseq
      %v267 = vshrl.u32 %v266, 7
      %v268 = vsub.s32 0, %v267
      %v269 = vrot.slane %v264, %v268
      %vm271 = vcmask 261120
      %v273 = vsel %vm271, %v228, 0
      %v276 = vsel %vm271, %v229, 0
      %v279 = vsel %vm271, %v230, 0
      %v282 = vsel %vm271, %v231, 0
      %v285 = vsel %vm271, %v232, 0
      %v288 = vsel %vm271, %v233, 0
      %v291 = vsel %vm271, %v234, 0
      %v294 = vsel %vm271, %v235, 0
      %v297 = vsel %vm271, %v236, 0
      %v300 = vsel %vm271, %v237, 0
      %v303 = vsel %vm271, %v238, 0
      %v306 = vsel %vm271, %v239, 0
      %v309 = vsel %vm271, %v240, 0
      %v312 = vsel %vm271, %v241, 0
      %v315 = vsel %vm271, %v242, 0
      %v318 = vsel %vm271, %v243, 0
      %v321 = vsel %vm271, %v244, 0
      %v324 = vsel %vm271, %v245, 0
      %v327 = vsel %vm271, %v246, 0
      %v330 = vsel %vm271, %v247, 0
      %v333 = vsel %vm271, %v248, 0
      %v336 = vsel %vm271, %v249, 0
      %v339 = vsel %vm271, %v250, 0
      %v342 = vsel %vm271, %v251, 0
      %v345 = vsel %vm271, %v252, 0
      %v348 = vsel %vm271, %v253, 0
      %v351 = vsel %vm271, %v254, 0
      %v354 = vsel %vm271, %v255, 0
      %v357 = vsel %vm271, %v256, 0
      %v360 = vsel %vm271, %v257, 0
      %v363 = vsel %vm271, %v258, 0
      %v366 = vsel %vm271, %v259, 0
      %368 = vmatprep.subr.mxu0 0.0
      %369 = vmatpush1.msra.mxu0 0.0
      %370 = vmatprep.subr.mxu0 0.0
      %371 = vmatpush1.msra.mxu0 0.0
      %372 = vmatprep.subr.mxu0 0.0
      %373 = vmatpush1.msra.mxu0 0.0
      %374 = vmatprep.subr.mxu0 0.0
      %375 = vmatpush1.msra.mxu0 0.0
      %376 = vmatprep.subr.mxu0 0.0
      %377 = vmatpush1.msra.mxu0 0.0
      %378 = vmatprep.subr.mxu0 0.0
      %379 = vmatpush1.msra.mxu0 0.0
      %380 = vmatprep.subr.mxu0 0.0
      %381 = vmatpush1.msra.mxu0 0.0
      %382 = vmatprep.subr.mxu0 0.0
      %383 = vmatpush1.msra.mxu0 0.0
      %384 = vmatprep.subr.mxu0 0.0
      %385 = vmatpush1.msra.mxu0 0.0
      %386 = vmatprep.subr.mxu0 0.0
      %387 = vmatpush1.msra.mxu0 0.0
      %388 = vmatprep.subr.mxu0 0.0
      %389 = vmatpush1.msra.mxu0 0.0
      %390 = vmatprep.subr.mxu0 0.0
      %391 = vmatpush1.msra.mxu0 0.0
      %392 = vmatprep.subr.mxu0 0.0
      %393 = vmatpush1.msra.mxu0 %v263
      %394 = vmatprep.subr.mxu0 0.0
      %395 = vmatpush1.msra.mxu0 %v262
      %396 = vmatprep.subr.mxu0 0.0
      %397 = vmatpush1.msra.mxu0 %v261
      %398 = vmatprep.subr.mxu0 0.0
      %399 = vmatpush1.msra.mxu0 %v260
      %400 = vmatprep.subr.mxu0 0.0
      %401 = vmatpush2.msra.mxu0 0.0
      %402 = vmatprep.subr.mxu0 0.0
      %403 = vmatpush2.msra.mxu0 0.0
      %404 = vmatprep.subr.mxu0 0.0
      %405 = vmatpush2.msra.mxu0 0.0
      %406 = vmatprep.subr.mxu0 0.0
      %407 = vmatpush2.msra.mxu0 0.0
      %408 = vmatprep.subr.mxu0 0.0
      %409 = vmatpush2.msra.mxu0 0.0
      %410 = vmatprep.subr.mxu0 0.0
      %411 = vmatpush2.msra.mxu0 0.0
      %412 = vmatprep.subr.mxu0 0.0
      %413 = vmatpush2.msra.mxu0 0.0
      %414 = vmatprep.subr.mxu0 0.0
      %415 = vmatpush2.msra.mxu0 0.0
      %416 = vmatprep.subr.mxu0 0.0
      %417 = vmatpush2.msra.mxu0 0.0
      %418 = vmatprep.subr.mxu0 0.0
      %419 = vmatpush2.msra.mxu0 0.0
      %420 = vmatprep.subr.mxu0 0.0
      %421 = vmatpush2.msra.mxu0 0.0
      %422 = vmatprep.subr.mxu0 0.0
      %423 = vmatpush2.msra.mxu0 0.0
      %424 = vmatprep.subr.mxu0 0.0
      %425 = vmatpush2.msra.mxu0 0.0
      %426 = vmatprep.subr.mxu0 0.0
      %427 = vmatpush2.msra.mxu0 0.0
      %428 = vmatprep.subr.mxu0 0.0
      %429 = vmatpush2.msra.mxu0 0.0
      %430 = vmatprep.subr.mxu0 0.0
      %431 = vmatpush2.msra.mxu0 0.0
      %432 = vmatprep.mubr.f32.mxu0 0.0
      %433 = vmatmul.mubr.f32.gmra.mxu0 %v273
      %v434 = vpop.f32.mrf.mxu0
      %v435 = vadd.f32 %v269, %v434
      %v436 = vpop.f32.mrf.mxu0
      %437 = vmatprep.mubr.f32.mxu0 0.0
      %438 = vmatmul.mubr.f32.gmra.mxu0 %v276
      %v439 = vpop.f32.mrf.mxu0
      %v440 = vadd.f32 %v269, %v439
      %v441 = vpop.f32.mrf.mxu0
      %442 = vmatprep.mubr.f32.mxu0 0.0
      %443 = vmatmul.mubr.f32.gmra.mxu0 %v279
      %v444 = vpop.f32.mrf.mxu0
      %v445 = vadd.f32 %v269, %v444
      %v446 = vpop.f32.mrf.mxu0
      %447 = vmatprep.mubr.f32.mxu0 0.0
      %448 = vmatmul.mubr.f32.gmra.mxu0 %v282
      %v449 = vpop.f32.mrf.mxu0
      %v450 = vadd.f32 %v269, %v449
      %v451 = vpop.f32.mrf.mxu0
      %452 = vmatprep.mubr.f32.mxu0 0.0
      %453 = vmatmul.mubr.f32.gmra.mxu0 %v285
      %v454 = vpop.f32.mrf.mxu0
      %v455 = vadd.f32 %v269, %v454
      %v456 = vpop.f32.mrf.mxu0
      %457 = vmatprep.mubr.f32.mxu0 0.0
      %458 = vmatmul.mubr.f32.gmra.mxu0 %v288
      %v459 = vpop.f32.mrf.mxu0
      %v460 = vadd.f32 %v269, %v459
      %v461 = vpop.f32.mrf.mxu0
      %462 = vmatprep.mubr.f32.mxu0 0.0
      %463 = vmatmul.mubr.f32.gmra.mxu0 %v291
      %v464 = vpop.f32.mrf.mxu0
      %v465 = vadd.f32 %v269, %v464
      %v466 = vpop.f32.mrf.mxu0
      %467 = vmatprep.mubr.f32.mxu0 0.0
      %468 = vmatmul.mubr.f32.gmra.mxu0 %v294
      %v469 = vpop.f32.mrf.mxu0
      %v470 = vadd.f32 %v269, %v469
      %v471 = vpop.f32.mrf.mxu0
      %472 = vmatprep.mubr.f32.mxu0 0.0
      %473 = vmatmul.mubr.f32.gmra.mxu0 %v297
      %v474 = vpop.f32.mrf.mxu0
      %v475 = vadd.f32 %v269, %v474
      %v476 = vpop.f32.mrf.mxu0
      %477 = vmatprep.mubr.f32.mxu0 0.0
      %478 = vmatmul.mubr.f32.gmra.mxu0 %v300
      %v479 = vpop.f32.mrf.mxu0
      %v480 = vadd.f32 %v269, %v479
      %v481 = vpop.f32.mrf.mxu0
      %482 = vmatprep.mubr.f32.mxu0 0.0
      %483 = vmatmul.mubr.f32.gmra.mxu0 %v303
      %v484 = vpop.f32.mrf.mxu0
      %v485 = vadd.f32 %v269, %v484
      %v486 = vpop.f32.mrf.mxu0
      %487 = vmatprep.mubr.f32.mxu0 0.0
      %488 = vmatmul.mubr.f32.gmra.mxu0 %v306
      %v489 = vpop.f32.mrf.mxu0
      %v490 = vadd.f32 %v269, %v489
      %v491 = vpop.f32.mrf.mxu0
      %492 = vmatprep.mubr.f32.mxu0 0.0
      %493 = vmatmul.mubr.f32.gmra.mxu0 %v309
      %v494 = vpop.f32.mrf.mxu0
      %v495 = vadd.f32 %v269, %v494
      %v496 = vpop.f32.mrf.mxu0
      %497 = vmatprep.mubr.f32.mxu0 0.0
      %498 = vmatmul.mubr.f32.gmra.mxu0 %v312
      %v499 = vpop.f32.mrf.mxu0
      %v500 = vadd.f32 %v269, %v499
      %v501 = vpop.f32.mrf.mxu0
      %502 = vmatprep.mubr.f32.mxu0 0.0
      %503 = vmatmul.mubr.f32.gmra.mxu0 %v315
      %v504 = vpop.f32.mrf.mxu0
      %v505 = vadd.f32 %v269, %v504
      %v506 = vpop.f32.mrf.mxu0
      %507 = vmatprep.mubr.f32.mxu0 0.0
      %508 = vmatmul.mubr.f32.gmra.mxu0 %v318
      %v509 = vpop.f32.mrf.mxu0
      %v510 = vadd.f32 %v269, %v509
      %v511 = vpop.f32.mrf.mxu0
      %512 = vmatprep.mubr.f32.mxu0 0.0
      %513 = vmatmul.mubr.f32.gmra.mxu0 %v321
      %v514 = vpop.f32.mrf.mxu0
      %v515 = vadd.f32 %v269, %v514
      %v516 = vpop.f32.mrf.mxu0
      %517 = vmatprep.mubr.f32.mxu0 0.0
      %518 = vmatmul.mubr.f32.gmra.mxu0 %v324
      %v519 = vpop.f32.mrf.mxu0
      %v520 = vadd.f32 %v269, %v519
      %v521 = vpop.f32.mrf.mxu0
      %522 = vmatprep.mubr.f32.mxu0 0.0
      %523 = vmatmul.mubr.f32.gmra.mxu0 %v327
      %v524 = vpop.f32.mrf.mxu0
      %v525 = vadd.f32 %v269, %v524
      %v526 = vpop.f32.mrf.mxu0
      %527 = vmatprep.mubr.f32.mxu0 0.0
      %528 = vmatmul.mubr.f32.gmra.mxu0 %v330
      %v529 = vpop.f32.mrf.mxu0
      %v530 = vadd.f32 %v269, %v529
      %v531 = vpop.f32.mrf.mxu0
      %532 = vmatprep.mubr.f32.mxu0 0.0
      %533 = vmatmul.mubr.f32.gmra.mxu0 %v333
      %v534 = vpop.f32.mrf.mxu0
      %v535 = vadd.f32 %v269, %v534
      %v536 = vpop.f32.mrf.mxu0
      %537 = vmatprep.mubr.f32.mxu0 0.0
      %538 = vmatmul.mubr.f32.gmra.mxu0 %v336
      %v539 = vpop.f32.mrf.mxu0
      %v540 = vadd.f32 %v269, %v539
      %v541 = vpop.f32.mrf.mxu0
      %542 = vmatprep.mubr.f32.mxu0 0.0
      %543 = vmatmul.mubr.f32.gmra.mxu0 %v339
      %v544 = vpop.f32.mrf.mxu0
      %v545 = vadd.f32 %v269, %v544
      %v546 = vpop.f32.mrf.mxu0
      %547 = vmatprep.mubr.f32.mxu0 0.0
      %548 = vmatmul.mubr.f32.gmra.mxu0 %v342
      %v549 = vpop.f32.mrf.mxu0
      %v550 = vadd.f32 %v269, %v549
      %v551 = vpop.f32.mrf.mxu0
      %552 = vmatprep.mubr.f32.mxu0 0.0
      %553 = vmatmul.mubr.f32.gmra.mxu0 %v345
      %v554 = vpop.f32.mrf.mxu0
      %v555 = vadd.f32 %v269, %v554
      %v556 = vpop.f32.mrf.mxu0
      %557 = vmatprep.mubr.f32.mxu0 0.0
      %558 = vmatmul.mubr.f32.gmra.mxu0 %v348
      %v559 = vpop.f32.mrf.mxu0
      %v560 = vadd.f32 %v269, %v559
      %v561 = vpop.f32.mrf.mxu0
      %562 = vmatprep.mubr.f32.mxu0 0.0
      %563 = vmatmul.mubr.f32.gmra.mxu0 %v351
      %v564 = vpop.f32.mrf.mxu0
      %v565 = vadd.f32 %v269, %v564
      %v566 = vpop.f32.mrf.mxu0
      %567 = vmatprep.mubr.f32.mxu0 0.0
      %568 = vmatmul.mubr.f32.gmra.mxu0 %v354
      %v569 = vpop.f32.mrf.mxu0
      %v570 = vadd.f32 %v269, %v569
      %v571 = vpop.f32.mrf.mxu0
      %572 = vmatprep.mubr.f32.mxu0 0.0
      %573 = vmatmul.mubr.f32.gmra.mxu0 %v357
      %v574 = vpop.f32.mrf.mxu0
      %v575 = vadd.f32 %v269, %v574
      %v576 = vpop.f32.mrf.mxu0
      %577 = vmatprep.mubr.f32.mxu0 0.0
      %578 = vmatmul.mubr.f32.gmra.mxu0 %v360
      %v579 = vpop.f32.mrf.mxu0
      %v580 = vadd.f32 %v269, %v579
      %v581 = vpop.f32.mrf.mxu0
      %582 = vmatprep.mubr.f32.mxu0 0.0
      %583 = vmatmul.mubr.f32.gmra.mxu0 %v363
      %v584 = vpop.f32.mrf.mxu0
      %v585 = vadd.f32 %v269, %v584
      %v586 = vpop.f32.mrf.mxu0
      %587 = vmatprep.mubr.f32.mxu0 0.0
      %588 = vmatmul.mubr.f32.gmra.mxu0 %v366
      %v589 = vpop.f32.mrf.mxu0
      %v590 = vadd.f32 %v269, %v589
      %v591 = vpop.f32.mrf.mxu0
      %592 = vdwg.mxu0
      %v593 = vmax.f32 %v435, 0.0
      %v594 = vmax.f32 %v440, 0.0
      %v595 = vmax.f32 %v445, 0.0
      %v596 = vmax.f32 %v450, 0.0
      %v597 = vmax.f32 %v455, 0.0
      %v598 = vmax.f32 %v460, 0.0
      %v599 = vmax.f32 %v465, 0.0
      %v600 = vmax.f32 %v470, 0.0
      %v601 = vmax.f32 %v475, 0.0
      %v602 = vmax.f32 %v480, 0.0
      %v603 = vmax.f32 %v485, 0.0
      %v604 = vmax.f32 %v490, 0.0
      %v605 = vmax.f32 %v495, 0.0
      %v606 = vmax.f32 %v500, 0.0
      %v607 = vmax.f32 %v505, 0.0
      %v608 = vmax.f32 %v510, 0.0
      %v609 = vmax.f32 %v515, 0.0
      %v610 = vmax.f32 %v520, 0.0
      %v611 = vmax.f32 %v525, 0.0
      %v612 = vmax.f32 %v530, 0.0
      %v613 = vmax.f32 %v535, 0.0
      %v614 = vmax.f32 %v540, 0.0
      %v615 = vmax.f32 %v545, 0.0
      %v616 = vmax.f32 %v550, 0.0
      %v617 = vmax.f32 %v555, 0.0
      %v618 = vmax.f32 %v560, 0.0
      %v619 = vmax.f32 %v565, 0.0
      %v620 = vmax.f32 %v570, 0.0
      %v621 = vmax.f32 %v575, 0.0
      %v622 = vmax.f32 %v580, 0.0
      %v623 = vmax.f32 %v585, 0.0
      %v624 = vmax.f32 %v590, 0.0
      %v625 = vld [vmem:[%s3] sm:$0xff]
      %v626 = vld [vmem:[%s4] sm:$0x1]
      %v628 = vlaneseq
      %v629 = vshrl.u32 %v628, 7
      %v630 = vsub.s32 0, %v629
      %v631 = vrot.slane %v626, %v630
      %vm633 = vcmask 64512
      %v635 = vsel %vm633, %v593, 0
      %v638 = vsel %vm633, %v594, 0
      %v641 = vsel %vm633, %v595, 0
      %v644 = vsel %vm633, %v596, 0
      %v647 = vsel %vm633, %v597, 0
      %v650 = vsel %vm633, %v598, 0
      %v653 = vsel %vm633, %v599, 0
      %v656 = vsel %vm633, %v600, 0
      %v659 = vsel %vm633, %v601, 0
      %v662 = vsel %vm633, %v602, 0
      %v665 = vsel %vm633, %v603, 0
      %v668 = vsel %vm633, %v604, 0
      %v671 = vsel %vm633, %v605, 0
      %v674 = vsel %vm633, %v606, 0
      %v677 = vsel %vm633, %v607, 0
      %v680 = vsel %vm633, %v608, 0
      %v683 = vsel %vm633, %v609, 0
      %v686 = vsel %vm633, %v610, 0
      %v689 = vsel %vm633, %v611, 0
      %v692 = vsel %vm633, %v612, 0
      %v695 = vsel %vm633, %v613, 0
      %v698 = vsel %vm633, %v614, 0
      %v701 = vsel %vm633, %v615, 0
      %v704 = vsel %vm633, %v616, 0
      %v707 = vsel %vm633, %v617, 0
      %v710 = vsel %vm633, %v618, 0
      %v713 = vsel %vm633, %v619, 0
      %v716 = vsel %vm633, %v620, 0
      %v719 = vsel %vm633, %v621, 0
      %v722 = vsel %vm633, %v622, 0
      %v725 = vsel %vm633, %v623, 0
      %v728 = vsel %vm633, %v624, 0
      %730 = vmatprep.subr.mxu0 0.0
      %731 = vmatpush1.msra.mxu0 0.0
      %732 = vmatprep.subr.mxu0 0.0
      %733 = vmatpush1.msra.mxu0 0.0
      %734 = vmatprep.subr.mxu0 0.0
      %735 = vmatpush1.msra.mxu0 0.0
      %736 = vmatprep.subr.mxu0 0.0
      %737 = vmatpush1.msra.mxu0 0.0
      %738 = vmatprep.subr.mxu0 0.0
      %739 = vmatpush1.msra.mxu0 0.0
      %740 = vmatprep.subr.mxu0 0.0
      %741 = vmatpush1.msra.mxu0 0.0
      %742 = vmatprep.subr.mxu0 0.0
      %743 = vmatpush1.msra.mxu0 0.0
      %744 = vmatprep.subr.mxu0 0.0
      %745 = vmatpush1.msra.mxu0 0.0
      %746 = vmatprep.subr.mxu0 0.0
      %747 = vmatpush1.msra.mxu0 0.0
      %748 = vmatprep.subr.mxu0 0.0
      %749 = vmatpush1.msra.mxu0 0.0
      %750 = vmatprep.subr.mxu0 0.0
      %751 = vmatpush1.msra.mxu0 0.0
      %752 = vmatprep.subr.mxu0 0.0
      %753 = vmatpush1.msra.mxu0 0.0
      %754 = vmatprep.subr.mxu0 0.0
      %755 = vmatpush1.msra.mxu0 0.0
      %756 = vmatprep.subr.mxu0 0.0
      %757 = vmatpush1.msra.mxu0 0.0
      %758 = vmatprep.subr.mxu0 0.0
      %759 = vmatpush1.msra.mxu0 0.0
      %760 = vmatprep.subr.mxu0 0.0
      %761 = vmatpush1.msra.mxu0 %v625
      %762 = vmatprep.subr.mxu0 0.0
      %763 = vmatpush2.msra.mxu0 0.0
      %764 = vmatprep.subr.mxu0 0.0
      %765 = vmatpush2.msra.mxu0 0.0
      %766 = vmatprep.subr.mxu0 0.0
      %767 = vmatpush2.msra.mxu0 0.0
      %768 = vmatprep.subr.mxu0 0.0
      %769 = vmatpush2.msra.mxu0 0.0
      %770 = vmatprep.subr.mxu0 0.0
      %771 = vmatpush2.msra.mxu0 0.0
      %772 = vmatprep.subr.mxu0 0.0
      %773 = vmatpush2.msra.mxu0 0.0
      %774 = vmatprep.subr.mxu0 0.0
      %775 = vmatpush2.msra.mxu0 0.0
      %776 = vmatprep.subr.mxu0 0.0
      %777 = vmatpush2.msra.mxu0 0.0
      %778 = vmatprep.subr.mxu0 0.0
      %779 = vmatpush2.msra.mxu0 0.0
      %780 = vmatprep.subr.mxu0 0.0
      %781 = vmatpush2.msra.mxu0 0.0
      %782 = vmatprep.subr.mxu0 0.0
      %783 = vmatpush2.msra.mxu0 0.0
      %784 = vmatprep.subr.mxu0 0.0
      %785 = vmatpush2.msra.mxu0 0.0
      %786 = vmatprep.subr.mxu0 0.0
      %787 = vmatpush2.msra.mxu0 0.0
      %788 = vmatprep.subr.mxu0 0.0
      %789 = vmatpush2.msra.mxu0 0.0
      %790 = vmatprep.subr.mxu0 0.0
      %791 = vmatpush2.msra.mxu0 0.0
      %792 = vmatprep.subr.mxu0 0.0
      %793 = vmatpush2.msra.mxu0 0.0
      %794 = vmatprep.mubr.f32.mxu0 0.0
      %795 = vmatmul.mubr.f32.gmra.mxu0 %v635
      %v796 = vpop.f32.mrf.mxu0
      %v797 = vadd.f32 %v631, %v796
      %v798 = vpop.f32.mrf.mxu0
      %799 = vmatprep.mubr.f32.mxu0 0.0
      %800 = vmatmul.mubr.f32.gmra.mxu0 %v638
      %v801 = vpop.f32.mrf.mxu0
      %v802 = vadd.f32 %v631, %v801
      %v803 = vpop.f32.mrf.mxu0
      %804 = vmatprep.mubr.f32.mxu0 0.0
      %805 = vmatmul.mubr.f32.gmra.mxu0 %v641
      %v806 = vpop.f32.mrf.mxu0
      %v807 = vadd.f32 %v631, %v806
      %v808 = vpop.f32.mrf.mxu0
      %809 = vmatprep.mubr.f32.mxu0 0.0
      %810 = vmatmul.mubr.f32.gmra.mxu0 %v644
      %v811 = vpop.f32.mrf.mxu0
      %v812 = vadd.f32 %v631, %v811
      %v813 = vpop.f32.mrf.mxu0
      %814 = vmatprep.mubr.f32.mxu0 0.0
      %815 = vmatmul.mubr.f32.gmra.mxu0 %v647
      %v816 = vpop.f32.mrf.mxu0
      %v817 = vadd.f32 %v631, %v816
      %v818 = vpop.f32.mrf.mxu0
      %819 = vmatprep.mubr.f32.mxu0 0.0
      %820 = vmatmul.mubr.f32.gmra.mxu0 %v650
      %v821 = vpop.f32.mrf.mxu0
      %v822 = vadd.f32 %v631, %v821
      %v823 = vpop.f32.mrf.mxu0
      %824 = vmatprep.mubr.f32.mxu0 0.0
      %825 = vmatmul.mubr.f32.gmra.mxu0 %v653
      %v826 = vpop.f32.mrf.mxu0
      %v827 = vadd.f32 %v631, %v826
      %v828 = vpop.f32.mrf.mxu0
      %829 = vmatprep.mubr.f32.mxu0 0.0
      %830 = vmatmul.mubr.f32.gmra.mxu0 %v656
      %v831 = vpop.f32.mrf.mxu0
      %v832 = vadd.f32 %v631, %v831
      %v833 = vpop.f32.mrf.mxu0
      %834 = vmatprep.mubr.f32.mxu0 0.0
      %835 = vmatmul.mubr.f32.gmra.mxu0 %v659
      %v836 = vpop.f32.mrf.mxu0
      %v837 = vadd.f32 %v631, %v836
      %v838 = vpop.f32.mrf.mxu0
      %839 = vmatprep.mubr.f32.mxu0 0.0
      %840 = vmatmul.mubr.f32.gmra.mxu0 %v662
      %v841 = vpop.f32.mrf.mxu0
      %v842 = vadd.f32 %v631, %v841
      %v843 = vpop.f32.mrf.mxu0
      %844 = vmatprep.mubr.f32.mxu0 0.0
      %845 = vmatmul.mubr.f32.gmra.mxu0 %v665
      %v846 = vpop.f32.mrf.mxu0
      %v847 = vadd.f32 %v631, %v846
      %v848 = vpop.f32.mrf.mxu0
      %849 = vmatprep.mubr.f32.mxu0 0.0
      %850 = vmatmul.mubr.f32.gmra.mxu0 %v668
      %v851 = vpop.f32.mrf.mxu0
      %v852 = vadd.f32 %v631, %v851
      %v853 = vpop.f32.mrf.mxu0
      %854 = vmatprep.mubr.f32.mxu0 0.0
      %855 = vmatmul.mubr.f32.gmra.mxu0 %v671
      %v856 = vpop.f32.mrf.mxu0
      %v857 = vadd.f32 %v631, %v856
      %v858 = vpop.f32.mrf.mxu0
      %859 = vmatprep.mubr.f32.mxu0 0.0
      %860 = vmatmul.mubr.f32.gmra.mxu0 %v674
      %v861 = vpop.f32.mrf.mxu0
      %v862 = vadd.f32 %v631, %v861
      %v863 = vpop.f32.mrf.mxu0
      %864 = vmatprep.mubr.f32.mxu0 0.0
      %865 = vmatmul.mubr.f32.gmra.mxu0 %v677
      %v866 = vpop.f32.mrf.mxu0
      %v867 = vadd.f32 %v631, %v866
      %v868 = vpop.f32.mrf.mxu0
      %869 = vmatprep.mubr.f32.mxu0 0.0
      %870 = vmatmul.mubr.f32.gmra.mxu0 %v680
      %v871 = vpop.f32.mrf.mxu0
      %v872 = vadd.f32 %v631, %v871
      %v873 = vpop.f32.mrf.mxu0
      %874 = vmatprep.mubr.f32.mxu0 0.0
      %875 = vmatmul.mubr.f32.gmra.mxu0 %v683
      %v876 = vpop.f32.mrf.mxu0
      %v877 = vadd.f32 %v631, %v876
      %v878 = vpop.f32.mrf.mxu0
      %879 = vmatprep.mubr.f32.mxu0 0.0
      %880 = vmatmul.mubr.f32.gmra.mxu0 %v686
      %v881 = vpop.f32.mrf.mxu0
      %v882 = vadd.f32 %v631, %v881
      %v883 = vpop.f32.mrf.mxu0
      %884 = vmatprep.mubr.f32.mxu0 0.0
      %885 = vmatmul.mubr.f32.gmra.mxu0 %v689
      %v886 = vpop.f32.mrf.mxu0
      %v887 = vadd.f32 %v631, %v886
      %v888 = vpop.f32.mrf.mxu0
      %889 = vmatprep.mubr.f32.mxu0 0.0
      %890 = vmatmul.mubr.f32.gmra.mxu0 %v692
      %v891 = vpop.f32.mrf.mxu0
      %v892 = vadd.f32 %v631, %v891
      %v893 = vpop.f32.mrf.mxu0
      %894 = vmatprep.mubr.f32.mxu0 0.0
      %895 = vmatmul.mubr.f32.gmra.mxu0 %v695
      %v896 = vpop.f32.mrf.mxu0
      %v897 = vadd.f32 %v631, %v896
      %v898 = vpop.f32.mrf.mxu0
      %899 = vmatprep.mubr.f32.mxu0 0.0
      %900 = vmatmul.mubr.f32.gmra.mxu0 %v698
      %v901 = vpop.f32.mrf.mxu0
      %v902 = vadd.f32 %v631, %v901
      %v903 = vpop.f32.mrf.mxu0
      %904 = vmatprep.mubr.f32.mxu0 0.0
      %905 = vmatmul.mubr.f32.gmra.mxu0 %v701
      %v906 = vpop.f32.mrf.mxu0
      %v907 = vadd.f32 %v631, %v906
      %v908 = vpop.f32.mrf.mxu0
      %909 = vmatprep.mubr.f32.mxu0 0.0
      %910 = vmatmul.mubr.f32.gmra.mxu0 %v704
      %v911 = vpop.f32.mrf.mxu0
      %v912 = vadd.f32 %v631, %v911
      %v913 = vpop.f32.mrf.mxu0
      %914 = vmatprep.mubr.f32.mxu0 0.0
      %915 = vmatmul.mubr.f32.gmra.mxu0 %v707
      %v916 = vpop.f32.mrf.mxu0
      %v917 = vadd.f32 %v631, %v916
      %v918 = vpop.f32.mrf.mxu0
      %919 = vmatprep.mubr.f32.mxu0 0.0
      %920 = vmatmul.mubr.f32.gmra.mxu0 %v710
      %v921 = vpop.f32.mrf.mxu0
      %v922 = vadd.f32 %v631, %v921
      %v923 = vpop.f32.mrf.mxu0
      %924 = vmatprep.mubr.f32.mxu0 0.0
      %925 = vmatmul.mubr.f32.gmra.mxu0 %v713
      %v926 = vpop.f32.mrf.mxu0
      %v927 = vadd.f32 %v631, %v926
      %v928 = vpop.f32.mrf.mxu0
      %929 = vmatprep.mubr.f32.mxu0 0.0
      %930 = vmatmul.mubr.f32.gmra.mxu0 %v716
      %v931 = vpop.f32.mrf.mxu0
      %v932 = vadd.f32 %v631, %v931
      %v933 = vpop.f32.mrf.mxu0
      %934 = vmatprep.mubr.f32.mxu0 0.0
      %935 = vmatmul.mubr.f32.gmra.mxu0 %v719
      %v936 = vpop.f32.mrf.mxu0
      %v937 = vadd.f32 %v631, %v936
      %v938 = vpop.f32.mrf.mxu0
      %939 = vmatprep.mubr.f32.mxu0 0.0
      %940 = vmatmul.mubr.f32.gmra.mxu0 %v722
      %v941 = vpop.f32.mrf.mxu0
      %v942 = vadd.f32 %v631, %v941
      %v943 = vpop.f32.mrf.mxu0
      %944 = vmatprep.mubr.f32.mxu0 0.0
      %945 = vmatmul.mubr.f32.gmra.mxu0 %v725
      %v946 = vpop.f32.mrf.mxu0
      %v947 = vadd.f32 %v631, %v946
      %v948 = vpop.f32.mrf.mxu0
      %949 = vmatprep.mubr.f32.mxu0 0.0
      %950 = vmatmul.mubr.f32.gmra.mxu0 %v728
      %v951 = vpop.f32.mrf.mxu0
      %v952 = vadd.f32 %v631, %v951
      %v953 = vpop.f32.mrf.mxu0
      %954 = vdwg.mxu0
      %vm955 = vcmask 523264
      %956 = vst.msk [vmem:[%s226] sm:$0xff] %vm955, %v797
      %957 = vst.msk [vmem:[%s226 + $0x8] sm:$0xff] %vm955, %v802
      %958 = vst.msk [vmem:[%s226 + $0x10] sm:$0xff] %vm955, %v807
      %959 = vst.msk [vmem:[%s226 + $0x18] sm:$0xff] %vm955, %v812
      %960 = vst.msk [vmem:[%s226 + $0x20] sm:$0xff] %vm955, %v817
      %961 = vst.msk [vmem:[%s226 + $0x28] sm:$0xff] %vm955, %v822
      %962 = vst.msk [vmem:[%s226 + $0x30] sm:$0xff] %vm955, %v827
      %963 = vst.msk [vmem:[%s226 + $0x38] sm:$0xff] %vm955, %v832
      %964 = vst.msk [vmem:[%s226 + $0x40] sm:$0xff] %vm955, %v837
      %965 = vst.msk [vmem:[%s226 + $0x48] sm:$0xff] %vm955, %v842
      %966 = vst.msk [vmem:[%s226 + $0x50] sm:$0xff] %vm955, %v847
      %967 = vst.msk [vmem:[%s226 + $0x58] sm:$0xff] %vm955, %v852
      %968 = vst.msk [vmem:[%s226 + $0x60] sm:$0xff] %vm955, %v857
      %969 = vst.msk [vmem:[%s226 + $0x68] sm:$0xff] %vm955, %v862
      %970 = vst.msk [vmem:[%s226 + $0x70] sm:$0xff] %vm955, %v867
      %971 = vst.msk [vmem:[%s226 + $0x78] sm:$0xff] %vm955, %v872
      %972 = vst.msk [vmem:[%s226 + $0x80] sm:$0xff] %vm955, %v877
      %973 = vst.msk [vmem:[%s226 + $0x88] sm:$0xff] %vm955, %v882
      %974 = vst.msk [vmem:[%s226 + $0x90] sm:$0xff] %vm955, %v887
      %975 = vst.msk [vmem:[%s226 + $0x98] sm:$0xff] %vm955, %v892
      %976 = vst.msk [vmem:[%s226 + $0xa0] sm:$0xff] %vm955, %v897
      %977 = vst.msk [vmem:[%s226 + $0xa8] sm:$0xff] %vm955, %v902
      %978 = vst.msk [vmem:[%s226 + $0xb0] sm:$0xff] %vm955, %v907
      %979 = vst.msk [vmem:[%s226 + $0xb8] sm:$0xff] %vm955, %v912
      %980 = vst.msk [vmem:[%s226 + $0xc0] sm:$0xff] %vm955, %v917
      %981 = vst.msk [vmem:[%s226 + $0xc8] sm:$0xff] %vm955, %v922
      %982 = vst.msk [vmem:[%s226 + $0xd0] sm:$0xff] %vm955, %v927
      %983 = vst.msk [vmem:[%s226 + $0xd8] sm:$0xff] %vm955, %v932
      %984 = vst.msk [vmem:[%s226 + $0xe0] sm:$0xff] %vm955, %v937
      %985 = vst.msk [vmem:[%s226 + $0xe8] sm:$0xff] %vm955, %v942
      %986 = vst.msk [vmem:[%s226 + $0xf0] sm:$0xff] %vm955, %v947
      %987 = vst.msk [vmem:[%s226 + $0xf8] sm:$0xff] %vm955, %v952
      %s988 = smul.u32 32, %s16
      %p989 = scmp.lt.s32.totalorder %s988, 63
      %s990 = scalar_select %p989, %s988, 63
      %s991 = smul.addr %s990, 8
      %s992 = scalar_lea.vmem %s5, %s991
      // Predicated region
      $region41: #{tpu_custom_call.1} parent=39 // pred_check
        %p993 = pneg %p144
      $region42: #{tpu_custom_call.1} parent=39 // pred_check_branch
        %995 = sbr.rel (%p993) target = $region44
      $region43: #{tpu_custom_call.1} parent=39 // pred_region
        %s996 = smul.u32 32, %s16
      $region44: #{tpu_custom_call.1} parent=39 // pred_fallthru
        _
    $region40: #{tpu_custom_call.1} parent=5 // pred_fallthru
      _
    %p997 = scmp.le.s32.totalorder 2, %s11
    // Predicated region
    $region45: #{tpu_custom_call.1} parent=5 // pred_check
      %p998 = pneg %p997
    $region46: #{tpu_custom_call.1} parent=5 // pred_check_branch
      %1000 = sbr.rel (%p998) target = $region48
    $region47: #{tpu_custom_call.1} parent=5 // pred_region
      %s1001 = ssub.s32 %s11, 2
      // Predicated region
      $region49: #{tpu_custom_call.1} parent=47 // pred_check
        %p1002 = pneg %p150
      $region50: #{tpu_custom_call.1} parent=47 // pred_check_branch
        %1004 = sbr.rel (%p1002) target = $region52
      $region51: #{tpu_custom_call.1} parent=47 // pred_region
        %s1005 = smul.u32 32, %s17
        %p1006 = scmp.lt.s32.totalorder %s1005, 63
        %s1007 = scalar_select %p1006, %s1005, 63
        %s1008 = smul.addr %s1007, 8
        %s1009 = scalar_lea.vmem %s5, %s1008
      $region52: #{tpu_custom_call.1} parent=47 // pred_fallthru
        _
    $region48: #{tpu_custom_call.1} parent=5 // pred_fallthru
      _
  $region6: #{tpu_custom_call.1} parent=0 // loop_footer
    %s15 = sadd.s32 1, %s11
  $region7: #{tpu_custom_call.1} parent=0 // loop_footer_branch
    %10 = sbr.rel target = $region3
  $region8: #{tpu_custom_call.1} parent=0 // loop_exit
    _

</llo_original>
